<compile_context>
chip_gen: v7x
topology: tpu7x:2x2x1
jax: 0.10.0
libtpu: 0.0.40
codegen_flags: <defaults>
</compile_context>

<pallas_src>
import functools

import jax
import jax.numpy as jnp
import numpy as np
from jax.experimental import pallas as pl
from jax.experimental.pallas import tpu as pltpu

EPS = 1e-5


def make_ffc_kernel(dims, B, L, F_pad):
    in_cl, in_cg, out_cl, out_cg, cf = dims
    BL = B * L
    F = L // 2 + 1
    n_main = float(BL)      # BatchNorm1d: stats over (batch, length)
    n_fu = float(B * F)     # FourierUnit BN: stats over (batch, real freqs)

    def mm(a16, b16):
        # operands are already bf16; f32 accumulation -> single-pass MXU matmul
        return jnp.dot(a16, b16, preferred_element_type=jnp.float32)

    def bn(x, gamma, beta, count):
        # Training-mode BatchNorm1d over the column axis.  One-pass statistics
        # with the TRUE element count: zero padded columns contribute nothing
        # to the sums, so statistics exactly match the unpadded tensor.
        # TODO(synk): one-pass E[x^2]-mean^2 can cancel when |mean| >> std;
        #             acceptable for the roughly zero-mean post-conv slabs here.
        inv_n = 1.0 / count
        mean = jnp.sum(x, axis=1, keepdims=True) * inv_n
        var = jnp.sum(x * x, axis=1, keepdims=True) * inv_n - mean * mean
        scale = gamma * jax.lax.rsqrt(var + EPS)
        return x * scale + (beta - mean * scale)

    relu = lambda v: jnp.maximum(v, 0.0)

    def kernel(x_ref, w1_ref, g_st1_ref, b_st1_ref,
               w_fu_ref, g_fu_ref, b_fu_ref, w_st2_ref,
               g_l_ref, b_l_ref, g_g_ref, b_g_ref,
               dft_ref, idft_r_ref, idft_i_ref,
               out_l_ref, out_g_ref,
               freq_sc, z_sc):
        x = x_ref[...]                                    # bf16 (in_cl+in_cg, BL)

        # ---- Stage 1: l2l/g2l, l2g and SpectralTransformer.conv1 merged into
        #      a single MXU matmul via a zero-padded block weight.
        y1 = mm(w1_ref[...], x)                           # (out_cl+out_cg+cf, BL)
        y_l = y1[:out_cl]                                 # FFC local branch
        l2g = y1[out_cl:out_cl + out_cg]                  # FFC l2g
        s = relu(bn(y1[out_cl + out_cg:],                 # ST.conv1 + BN + ReLU
                    g_st1_ref[...], b_st1_ref[...], n_main))
        s16 = s.astype(jnp.bfloat16)                      # cast once, reused

        # ---- FourierUnit rfft: shared (L, 2*F_pad) ortho real-DFT operand,
        #      applied per batch on lane-aligned 128-column slices.  Real/imag
        #      parts land stacked along the rows of freq_sc -> no concatenates.
        dft = dft_ref[...]
        for b in range(B):
            f_b = mm(s16[:, b * L:(b + 1) * L], dft)      # (cf, 2*F_pad) f32
            freq_sc[:cf, b * F_pad:(b + 1) * F_pad] = f_b[:, :F_pad]
            freq_sc[cf:, b * F_pad:(b + 1) * F_pad] = f_b[:, F_pad:]

        # ---- merged real/imag 1x1 frequency conv + BN (true count excludes the
        #      zero padded frequency columns) + ReLU.
        y = relu(bn(mm(w_fu_ref[...], freq_sc[...].astype(jnp.bfloat16)),
                    g_fu_ref[...], b_fu_ref[...], n_fu))  # (2cf, B*F_pad) f32
        y16 = y.astype(jnp.bfloat16)                      # cast once, reused

        # ---- FourierUnit irfft: shared (F_pad, L) inverse operands; rows for
        #      padded / DC-imag / Nyquist-imag bins are exactly zero, so the
        #      post-BN/ReLU values there are annihilated.  (s + fu) is staged
        #      per batch into z_sc for SpectralTransformer.conv2.
        idft_r = idft_r_ref[...]
        idft_i = idft_i_ref[...]
        for b in range(B):
            fu_b = (mm(y16[:cf, b * F_pad:(b + 1) * F_pad], idft_r) +
                    mm(y16[cf:, b * F_pad:(b + 1) * F_pad], idft_i))  # (cf, L)
            z_sc[:, b * L:(b + 1) * L] = s[:, b * L:(b + 1) * L] + fu_b

        # ---- SpectralTransformer.conv2 and FFC global branch.
        y_g = mm(w_st2_ref[...], z_sc[...].astype(jnp.bfloat16)) + l2g

        # ---- FFC_BN_ACT heads: BatchNorm1d + Identity activation.
        out_l_ref[...] = bn(y_l, g_l_ref[...], b_l_ref[...], n_main)
        out_g_ref[...] = bn(y_g, g_g_ref[...], b_g_ref[...], n_main)

    return kernel


def dft_operands(L, F_pad):
    """Shared ortho rfft / irfft operands (one copy, batch-independent).

    D  : (L, 2*F_pad)   columns [0:F)=cos, [F_pad:F_pad+F)=-sin, rest zero.
    Ir : (F_pad, L)     inverse contribution of the real parts.
    Ii : (F_pad, L)     inverse contribution of the imag parts (zero rows at
                        DC, Nyquist and all padded bins).
    """
    F = L // 2 + 1
    n = np.arange(L)[:, None].astype(np.float64)
    k = np.arange(F)[None, :].astype(np.float64)
    ang = 2.0 * np.pi * n * k / L
    scale = 1.0 / np.sqrt(L)
    D = np.zeros((L, 2 * F_pad), np.float32)
    D[:, :F] = np.cos(ang) * scale
    D[:, F_pad:F_pad + F] = -np.sin(ang) * scale
    w = np.where((k == 0) | (k == L // 2), 1.0, 2.0)
    Ir = np.zeros((F_pad, L), np.float32)
    Ii = np.zeros((F_pad, L), np.float32)
    Ir[:F, :] = (w * np.cos(ang) * scale).T
    Ii[:F, :] = (-w * np.sin(ang) * scale).T
    return (jnp.asarray(D, jnp.bfloat16), jnp.asarray(Ir, jnp.bfloat16),
            jnp.asarray(Ii, jnp.bfloat16))


def init_params(key, in_channels, out_channels, ratio_gin, ratio_gout):
    in_cg = int(in_channels * ratio_gin)
    in_cl = in_channels - in_cg
    out_cg = int(out_channels * ratio_gout)
    out_cl = out_channels - out_cg
    cf = out_cg // 2                               # SpectralTransformer hidden
    ks = jax.random.split(key, 14)
    w = lambda k, shape: 0.2 * jax.random.normal(k, shape, jnp.float32)
    gm = lambda k, c: 1.0 + 0.1 * jax.random.normal(k, (c,), jnp.float32)
    bt = lambda k, c: 0.1 * jax.random.normal(k, (c,), jnp.float32)
    p = {
        "w_l2l": w(ks[0], (out_cl, in_cl)),
        "w_g2l": w(ks[1], (out_cl, in_cg)),
        "w_l2g": w(ks[2], (out_cg, in_cl)),
        "w_st1": w(ks[3], (cf, in_cg)),
        "g_st1": gm(ks[4], cf), "b_st1": bt(ks[5], cf),
        "w_fu_full": w(ks[6], (2 * cf, 2 * cf)),   # PyTorch interleaved layout
        "g_fu_full": gm(ks[7], 2 * cf), "b_fu_full": bt(ks[8], 2 * cf),
        "w_st2": w(ks[9], (out_cg, cf)),
        "g_l": gm(ks[10], out_cl), "b_l": bt(ks[11], out_cl),
        "g_g": gm(ks[12], out_cg), "b_g": bt(ks[13], out_cg),
    }
    return p, (in_cl, in_cg, out_cl, out_cg, cf)


def ffc_bn_act_forward(x_l, x_g, params, dims):
    in_cl, in_cg, out_cl, out_cg, cf = dims
    B, _, L = x_l.shape
    BL = B * L
    F = L // 2 + 1
    F_pad = max(128, ((F + 127) // 128) * 128)
    dft, idft_r, idft_i = dft_operands(L, F_pad)

    # (B, C, L) -> lane-dense (C, B*L), pre-cast to bf16 (MXU operand only).
    to2d = lambda a: jnp.transpose(a, (1, 0, 2)).reshape(a.shape[1], BL)
    x2d = jnp.concatenate([to2d(x_l), to2d(x_g)], axis=0).astype(jnp.bfloat16)

    bf = lambda a: jnp.asarray(a, jnp.bfloat16)
    col = lambda v: jnp.asarray(v, jnp.float32).reshape(-1, 1)

    # Merged stage-1 weight  [[ l2l | g2l ], [ l2g | 0 ], [ 0 | st1 ]]
    w1 = bf(jnp.concatenate([
        jnp.concatenate([params["w_l2l"], params["w_g2l"]], axis=1),
        jnp.concatenate([params["w_l2g"],
                         jnp.zeros((out_cg, in_cg), jnp.float32)], axis=1),
        jnp.concatenate([jnp.zeros((cf, in_cl), jnp.float32),
                         params["w_st1"]], axis=1)], axis=0))

    # De-interleave the FourierUnit conv from PyTorch's (r,i,r,i,...) channel
    # order into stacked [real | imag] blocks along rows and cols.
    perm = np.concatenate([np.arange(0, 2 * cf, 2), np.arange(1, 2 * cf, 2)])
    w_fu = bf(params["w_fu_full"][perm][:, perm])
    g_fu, b_fu = col(params["g_fu_full"][perm]), col(params["b_fu_full"][perm])

    inputs = [
        x2d, w1, col(params["g_st1"]), col(params["b_st1"]),
        w_fu, g_fu, b_fu, bf(params["w_st2"]),
        col(params["g_l"]), col(params["b_l"]),
        col(params["g_g"]), col(params["b_g"]),
        dft, idft_r, idft_i,
    ]

    # Advisory cost estimate (lets XLA schedule/overlap around the call).
    flops = 2 * BL * (in_cl + in_cg) * (out_cl + out_cg + cf)      # stage 1
    flops += 2 * B * cf * L * (2 * F_pad)                          # rfft
    flops += 2 * (2 * cf) * (2 * cf) * (B * F_pad)                 # freq conv
    flops += 2 * B * (2 * cf) * F_pad * L                          # irfft
    flops += 2 * BL * cf * out_cg                                  # conv2
    bytes_accessed = sum(int(np.prod(a.shape)) * a.dtype.itemsize for a in inputs)
    bytes_accessed += (out_cl + out_cg) * BL * 4

    vmem = lambda: pl.BlockSpec(memory_space=pltpu.MemorySpace.VMEM)
    out_l2d, out_g2d = pl.pallas_call(
        make_ffc_kernel(dims, B, L, F_pad),
        out_shape=(jax.ShapeDtypeStruct((out_cl, BL), jnp.float32),
                   jax.ShapeDtypeStruct((out_cg, BL), jnp.float32)),
        in_specs=[vmem() for _ in inputs],
        out_specs=(vmem(), vmem()),
        scratch_shapes=[pltpu.VMEM((2 * cf, B * F_pad), jnp.float32),  # freq_sc
                        pltpu.VMEM((cf, BL), jnp.float32)],            # z_sc
        compiler_params=pltpu.CompilerParams(vmem_limit_bytes=32 * 1024 * 1024),
        cost_estimate=pl.CostEstimate(flops=int(flops),
                                      transcendentals=int(out_cl + out_cg + 3 * cf),
                                      bytes_accessed=int(bytes_accessed)),
    )(*inputs)

    unpack = lambda o: o.reshape(o.shape[0], B, L).transpose(1, 0, 2)
    return unpack(out_l2d), unpack(out_g2d)


def reference_forward(x_l, x_g, p, dims, L):
    """Pure-JAX reference, structured exactly like the PyTorch module."""
    _, _, _, _, cf = dims
    B = x_l.shape[0]
    F = L // 2 + 1
    conv = lambda x, w: jnp.einsum("oc,bcl->bol", w, x,
                                   precision=jax.lax.Precision.HIGHEST)
    relu = lambda v: jnp.maximum(v, 0.0)

    def bn(x, g, b):
        mean = jnp.mean(x, axis=(0, 2), keepdims=True)
        var = jnp.mean((x - mean) ** 2, axis=(0, 2), keepdims=True)
        return ((x - mean) * jax.lax.rsqrt(var + EPS) * g.reshape(1, -1, 1)
                + b.reshape(1, -1, 1))

    # FFC.l2l / g2l
    y_l = conv(x_l, p["w_l2l"]) + conv(x_g, p["w_g2l"])
    # SpectralTransformer.conv1
    s = relu(bn(conv(x_g, p["w_st1"]), p["g_st1"], p["b_st1"]))
    # FourierUnit
    X = jnp.fft.rfft(s, axis=-1, norm="ortho")
    ff = jnp.stack([X.real, X.imag], axis=2).reshape(B, 2 * cf, F)
    y = relu(bn(conv(ff, p["w_fu_full"]), p["g_fu_full"], p["b_fu_full"]))
    y = y.reshape(B, cf, 2, F)
    fu = jnp.fft.irfft(y[:, :, 0, :] + 1j * y[:, :, 1, :],
                       n=L, axis=-1, norm="ortho")
    # SpectralTransformer.conv2 ; FFC.l2g
    g2g = conv(s + fu, p["w_st2"])
    y_g = g2g + conv(x_l, p["w_l2g"])
    # FFC_BN_ACT heads
    return bn(y_l, p["g_l"], p["b_l"]), bn(y_g, p["g_g"], p["b_g"])


if __name__ == "__main__":
    B, IN_C, OUT_C, L = 2, 16, 32, 128
    RATIO_GIN = RATIO_GOUT = 0.5

    key = jax.random.PRNGKey(0)
    kx, kp = jax.random.split(key)
    params, dims = init_params(kp, IN_C, OUT_C, RATIO_GIN, RATIO_GOUT)
    in_cl, in_cg, out_cl, out_cg, cf = dims

    kxl, kxg = jax.random.split(kx)
    x_l = jax.random.normal(kxl, (B, in_cl, L), jnp.float32)
    x_g = jax.random.normal(kxg, (B, in_cg, L), jnp.float32)

    fwd = jax.jit(functools.partial(ffc_bn_act_forward, params=params, dims=dims))
    out_l, out_g = fwd(x_l, x_g)
    jax.block_until_ready((out_l, out_g))

    ref_l, ref_g = reference_forward(x_l, x_g, params, dims, L)
    # bf16 MXU operands with f32 accumulation: expected |err| ~ 1e-2 on O(1)
    # post-BatchNorm outputs, hence the 5e-2 tolerances (deliberate trade).
    np.testing.assert_allclose(np.asarray(out_l), np.asarray(ref_l),
                               rtol=5e-2, atol=5e-2)
    np.testing.assert_allclose(np.asarray(out_g), np.asarray(ref_g),
                               rtol=5e-2, atol=5e-2)
    print("KERNEL_OK")
</pallas_src>

<mosaic_0001>
module attributes {stable_mosaic.version = 11 : i64} {
  func.func @kernel(%arg0: memref<16x256xbf16, #tpu.memory_space<vmem>>, %arg1: memref<40x16xbf16, #tpu.memory_space<vmem>>, %arg2: memref<8x1xf32, #tpu.memory_space<vmem>>, %arg3: memref<8x1xf32, #tpu.memory_space<vmem>>, %arg4: memref<16x16xbf16, #tpu.memory_space<vmem>>, %arg5: memref<16x1xf32, #tpu.memory_space<vmem>>, %arg6: memref<16x1xf32, #tpu.memory_space<vmem>>, %arg7: memref<16x8xbf16, #tpu.memory_space<vmem>>, %arg8: memref<16x1xf32, #tpu.memory_space<vmem>>, %arg9: memref<16x1xf32, #tpu.memory_space<vmem>>, %arg10: memref<16x1xf32, #tpu.memory_space<vmem>>, %arg11: memref<16x1xf32, #tpu.memory_space<vmem>>, %arg12: memref<128x256xbf16, #tpu.memory_space<vmem>>, %arg13: memref<128x128xbf16, #tpu.memory_space<vmem>>, %arg14: memref<128x128xbf16, #tpu.memory_space<vmem>>, %arg15: memref<16x256xf32, #tpu.memory_space<vmem>>, %arg16: memref<16x256xf32, #tpu.memory_space<vmem>>, %arg17: memref<16x256xf32, #tpu.memory_space<vmem>>, %arg18: memref<8x256xf32, #tpu.memory_space<vmem>>) attributes {dimension_semantics = [], scalar_prefetch = 0 : i64, scratch_operands = 2 : i64, tpu.core_type = #tpu.core_type<tc>} {
    %c0 = arith.constant 0 : index
    %c0_0 = arith.constant 0 : index
    %0 = vector.load %arg0[%c0, %c0_0] : memref<16x256xbf16, #tpu.memory_space<vmem>>, vector<16x256xbf16>
    %c0_1 = arith.constant 0 : index
    %c0_2 = arith.constant 0 : index
    %1 = vector.load %arg1[%c0_1, %c0_2] : memref<40x16xbf16, #tpu.memory_space<vmem>>, vector<40x16xbf16>
    %cst = arith.constant dense<0.000000e+00> : vector<40x256xf32>
    %2 = tpu.matmul %1, %0, %cst {dimension_numbers = #tpu.dot_dimension_numbers<[1], [0], [0], [1], [0, 0, 1, 1], [], []>} : vector<40x16xbf16>, vector<16x256xbf16>, vector<40x256xf32> -> vector<40x256xf32>
    %3 = vector.extract_strided_slice %2 {offsets = [0, 0], sizes = [16, 256], strides = [1, 1]} : vector<40x256xf32> to vector<16x256xf32>
    %4 = vector.extract_strided_slice %2 {offsets = [16, 0], sizes = [16, 256], strides = [1, 1]} : vector<40x256xf32> to vector<16x256xf32>
    %5 = vector.extract_strided_slice %2 {offsets = [32, 0], sizes = [8, 256], strides = [1, 1]} : vector<40x256xf32> to vector<8x256xf32>
    %c0_3 = arith.constant 0 : index
    %c0_4 = arith.constant 0 : index
    %6 = vector.load %arg2[%c0_3, %c0_4] : memref<8x1xf32, #tpu.memory_space<vmem>>, vector<8x1xf32>
    %c0_5 = arith.constant 0 : index
    %c0_6 = arith.constant 0 : index
    %7 = vector.load %arg3[%c0_5, %c0_6] : memref<8x1xf32, #tpu.memory_space<vmem>>, vector<8x1xf32>
    %cst_7 = arith.constant dense<0.000000e+00> : vector<8xf32>
    %8 = vector.multi_reduction <add>, %5, %cst_7 [1] : vector<8x256xf32> to vector<8xf32>
    %9 = vector.shape_cast %8 : vector<8xf32> to vector<8x1xf32>
    %cst_8 = arith.constant 3.906250e-03 : f32
    %10 = vector.broadcast %cst_8 : f32 to vector<8x1xf32>
    %11 = arith.mulf %9, %10 : vector<8x1xf32>
    %12 = arith.mulf %5, %5 : vector<8x256xf32>
    %cst_9 = arith.constant dense<0.000000e+00> : vector<8xf32>
    %13 = vector.multi_reduction <add>, %12, %cst_9 [1] : vector<8x256xf32> to vector<8xf32>
    %14 = vector.shape_cast %13 : vector<8xf32> to vector<8x1xf32>
    %cst_10 = arith.constant 3.906250e-03 : f32
    %15 = vector.broadcast %cst_10 : f32 to vector<8x1xf32>
    %16 = arith.mulf %14, %15 : vector<8x1xf32>
    %17 = arith.mulf %11, %11 : vector<8x1xf32>
    %18 = arith.subf %16, %17 : vector<8x1xf32>
    %cst_11 = arith.constant 9.99999974E-6 : f32
    %19 = vector.broadcast %cst_11 : f32 to vector<8x1xf32>
    %20 = arith.addf %18, %19 : vector<8x1xf32>
    %21 = math.rsqrt %20 : vector<8x1xf32>
    %22 = arith.mulf %6, %21 : vector<8x1xf32>
    %23 = vector.broadcast %22 : vector<8x1xf32> to vector<8x256xf32>
    %24 = arith.mulf %5, %23 : vector<8x256xf32>
    %25 = arith.mulf %11, %22 : vector<8x1xf32>
    %26 = arith.subf %7, %25 : vector<8x1xf32>
    %27 = vector.broadcast %26 : vector<8x1xf32> to vector<8x256xf32>
    %28 = arith.addf %24, %27 : vector<8x256xf32>
    %cst_12 = arith.constant 0.000000e+00 : f32
    %29 = vector.broadcast %cst_12 : f32 to vector<8x256xf32>
    %30 = arith.maximumf %28, %29 : vector<8x256xf32>
    %31 = arith.truncf %30 : vector<8x256xf32> to vector<8x256xbf16>
    %c0_13 = arith.constant 0 : index
    %c0_14 = arith.constant 0 : index
    %32 = vector.load %arg12[%c0_13, %c0_14] : memref<128x256xbf16, #tpu.memory_space<vmem>>, vector<128x256xbf16>
    %33 = vector.extract_strided_slice %31 {offsets = [0, 0], sizes = [8, 128], strides = [1, 1]} : vector<8x256xbf16> to vector<8x128xbf16>
    %cst_15 = arith.constant dense<0.000000e+00> : vector<8x256xf32>
    %34 = tpu.matmul %33, %32, %cst_15 {dimension_numbers = #tpu.dot_dimension_numbers<[1], [0], [0], [1], [0, 0, 1, 1], [], []>} : vector<8x128xbf16>, vector<128x256xbf16>, vector<8x256xf32> -> vector<8x256xf32>
    %35 = vector.extract_strided_slice %34 {offsets = [0, 0], sizes = [8, 128], strides = [1, 1]} : vector<8x256xf32> to vector<8x128xf32>
    %c0_16 = arith.constant 0 : index
    %c0_17 = arith.constant 0 : index
    %36 = vector.load %arg17[%c0_16, %c0_17] : memref<16x256xf32, #tpu.memory_space<vmem>>, vector<8x128xf32>
    tpu.vector_store %arg17[%c0_16, %c0_17], %35 {strides = array<i32>} : memref<16x256xf32, #tpu.memory_space<vmem>>, vector<8x128xf32>,
    %37 = vector.extract_strided_slice %34 {offsets = [0, 128], sizes = [8, 128], strides = [1, 1]} : vector<8x256xf32> to vector<8x128xf32>
    %c8 = arith.constant 8 : index
    %c0_18 = arith.constant 0 : index
    %38 = vector.load %arg17[%c8, %c0_18] : memref<16x256xf32, #tpu.memory_space<vmem>>, vector<8x128xf32>
    tpu.vector_store %arg17[%c8, %c0_18], %37 {strides = array<i32>} : memref<16x256xf32, #tpu.memory_space<vmem>>, vector<8x128xf32>,
    %39 = vector.extract_strided_slice %31 {offsets = [0, 128], sizes = [8, 128], strides = [1, 1]} : vector<8x256xbf16> to vector<8x128xbf16>
    %cst_19 = arith.constant dense<0.000000e+00> : vector<8x256xf32>
    %40 = tpu.matmul %39, %32, %cst_19 {dimension_numbers = #tpu.dot_dimension_numbers<[1], [0], [0], [1], [0, 0, 1, 1], [], []>} : vector<8x128xbf16>, vector<128x256xbf16>, vector<8x256xf32> -> vector<8x256xf32>
    %41 = vector.extract_strided_slice %40 {offsets = [0, 0], sizes = [8, 128], strides = [1, 1]} : vector<8x256xf32> to vector<8x128xf32>
    %c0_20 = arith.constant 0 : index
    %c128 = arith.constant 128 : index
    %42 = vector.load %arg17[%c0_20, %c128] : memref<16x256xf32, #tpu.memory_space<vmem>>, vector<8x128xf32>
    tpu.vector_store %arg17[%c0_20, %c128], %41 {strides = array<i32>} : memref<16x256xf32, #tpu.memory_space<vmem>>, vector<8x128xf32>,
    %43 = vector.extract_strided_slice %40 {offsets = [0, 128], sizes = [8, 128], strides = [1, 1]} : vector<8x256xf32> to vector<8x128xf32>
    %c8_21 = arith.constant 8 : index
    %c128_22 = arith.constant 128 : index
    %44 = vector.load %arg17[%c8_21, %c128_22] : memref<16x256xf32, #tpu.memory_space<vmem>>, vector<8x128xf32>
    tpu.vector_store %arg17[%c8_21, %c128_22], %43 {strides = array<i32>} : memref<16x256xf32, #tpu.memory_space<vmem>>, vector<8x128xf32>,
    %c0_23 = arith.constant 0 : index
    %c0_24 = arith.constant 0 : index
    %45 = vector.load %arg4[%c0_23, %c0_24] : memref<16x16xbf16, #tpu.memory_space<vmem>>, vector<16x16xbf16>
    %c0_25 = arith.constant 0 : index
    %c0_26 = arith.constant 0 : index
    %46 = vector.load %arg17[%c0_25, %c0_26] : memref<16x256xf32, #tpu.memory_space<vmem>>, vector<16x256xf32>
    %47 = arith.truncf %46 : vector<16x256xf32> to vector<16x256xbf16>
    %cst_27 = arith.constant dense<0.000000e+00> : vector<16x256xf32>
    %48 = tpu.matmul %45, %47, %cst_27 {dimension_numbers = #tpu.dot_dimension_numbers<[1], [0], [0], [1], [0, 0, 1, 1], [], []>} : vector<16x16xbf16>, vector<16x256xbf16>, vector<16x256xf32> -> vector<16x256xf32>
    %c0_28 = arith.constant 0 : index
    %c0_29 = arith.constant 0 : index
    %49 = vector.load %arg5[%c0_28, %c0_29] : memref<16x1xf32, #tpu.memory_space<vmem>>, vector<16x1xf32>
    %c0_30 = arith.constant 0 : index
    %c0_31 = arith.constant 0 : index
    %50 = vector.load %arg6[%c0_30, %c0_31] : memref<16x1xf32, #tpu.memory_space<vmem>>, vector<16x1xf32>
    %cst_32 = arith.constant dense<0.000000e+00> : vector<16xf32>
    %51 = vector.multi_reduction <add>, %48, %cst_32 [1] : vector<16x256xf32> to vector<16xf32>
    %52 = vector.shape_cast %51 : vector<16xf32> to vector<16x1xf32>
    %cst_33 = arith.constant 0.0076923077 : f32
    %53 = vector.broadcast %cst_33 : f32 to vector<16x1xf32>
    %54 = arith.mulf %52, %53 : vector<16x1xf32>
    %55 = arith.mulf %48, %48 : vector<16x256xf32>
    %cst_34 = arith.constant dense<0.000000e+00> : vector<16xf32>
    %56 = vector.multi_reduction <add>, %55, %cst_34 [1] : vector<16x256xf32> to vector<16xf32>
    %57 = vector.shape_cast %56 : vector<16xf32> to vector<16x1xf32>
    %cst_35 = arith.constant 0.0076923077 : f32
    %58 = vector.broadcast %cst_35 : f32 to vector<16x1xf32>
    %59 = arith.mulf %57, %58 : vector<16x1xf32>
    %60 = arith.mulf %54, %54 : vector<16x1xf32>
    %61 = arith.subf %59, %60 : vector<16x1xf32>
    %cst_36 = arith.constant 9.99999974E-6 : f32
    %62 = vector.broadcast %cst_36 : f32 to vector<16x1xf32>
    %63 = arith.addf %61, %62 : vector<16x1xf32>
    %64 = math.rsqrt %63 : vector<16x1xf32>
    %65 = arith.mulf %49, %64 : vector<16x1xf32>
    %66 = vector.broadcast %65 : vector<16x1xf32> to vector<16x256xf32>
    %67 = arith.mulf %48, %66 : vector<16x256xf32>
    %68 = arith.mulf %54, %65 : vector<16x1xf32>
    %69 = arith.subf %50, %68 : vector<16x1xf32>
    %70 = vector.broadcast %69 : vector<16x1xf32> to vector<16x256xf32>
    %71 = arith.addf %67, %70 : vector<16x256xf32>
    %cst_37 = arith.constant 0.000000e+00 : f32
    %72 = vector.broadcast %cst_37 : f32 to vector<16x256xf32>
    %73 = arith.maximumf %71, %72 : vector<16x256xf32>
    %74 = arith.truncf %73 : vector<16x256xf32> to vector<16x256xbf16>
    %c0_38 = arith.constant 0 : index
    %c0_39 = arith.constant 0 : index
    %75 = vector.load %arg13[%c0_38, %c0_39] : memref<128x128xbf16, #tpu.memory_space<vmem>>, vector<128x128xbf16>
    %c0_40 = arith.constant 0 : index
    %c0_41 = arith.constant 0 : index
    %76 = vector.load %arg14[%c0_40, %c0_41] : memref<128x128xbf16, #tpu.memory_space<vmem>>, vector<128x128xbf16>
    %77 = vector.extract_strided_slice %74 {offsets = [0, 0], sizes = [8, 128], strides = [1, 1]} : vector<16x256xbf16> to vector<8x128xbf16>
    %cst_42 = arith.constant dense<0.000000e+00> : vector<8x128xf32>
    %78 = tpu.matmul %77, %75, %cst_42 {dimension_numbers = #tpu.dot_dimension_numbers<[1], [0], [0], [1], [0, 0, 1, 1], [], []>} : vector<8x128xbf16>, vector<128x128xbf16>, vector<8x128xf32> -> vector<8x128xf32>
    %79 = vector.extract_strided_slice %74 {offsets = [8, 0], sizes = [8, 128], strides = [1, 1]} : vector<16x256xbf16> to vector<8x128xbf16>
    %cst_43 = arith.constant dense<0.000000e+00> : vector<8x128xf32>
    %80 = tpu.matmul %79, %76, %cst_43 {dimension_numbers = #tpu.dot_dimension_numbers<[1], [0], [0], [1], [0, 0, 1, 1], [], []>} : vector<8x128xbf16>, vector<128x128xbf16>, vector<8x128xf32> -> vector<8x128xf32>
    %81 = arith.addf %78, %80 : vector<8x128xf32>
    %82 = vector.extract_strided_slice %30 {offsets = [0, 0], sizes = [8, 128], strides = [1, 1]} : vector<8x256xf32> to vector<8x128xf32>
    %83 = arith.addf %82, %81 : vector<8x128xf32>
    %c0_44 = arith.constant 0 : index
    %c0_45 = arith.constant 0 : index
    %84 = vector.load %arg18[%c0_44, %c0_45] : memref<8x256xf32, #tpu.memory_space<vmem>>, vector<8x128xf32>
    tpu.vector_store %arg18[%c0_44, %c0_45], %83 {strides = array<i32>} : memref<8x256xf32, #tpu.memory_space<vmem>>, vector<8x128xf32>,
    %85 = vector.extract_strided_slice %74 {offsets = [0, 128], sizes = [8, 128], strides = [1, 1]} : vector<16x256xbf16> to vector<8x128xbf16>
    %cst_46 = arith.constant dense<0.000000e+00> : vector<8x128xf32>
    %86 = tpu.matmul %85, %75, %cst_46 {dimension_numbers = #tpu.dot_dimension_numbers<[1], [0], [0], [1], [0, 0, 1, 1], [], []>} : vector<8x128xbf16>, vector<128x128xbf16>, vector<8x128xf32> -> vector<8x128xf32>
    %87 = vector.extract_strided_slice %74 {offsets = [8, 128], sizes = [8, 128], strides = [1, 1]} : vector<16x256xbf16> to vector<8x128xbf16>
    %cst_47 = arith.constant dense<0.000000e+00> : vector<8x128xf32>
    %88 = tpu.matmul %87, %76, %cst_47 {dimension_numbers = #tpu.dot_dimension_numbers<[1], [0], [0], [1], [0, 0, 1, 1], [], []>} : vector<8x128xbf16>, vector<128x128xbf16>, vector<8x128xf32> -> vector<8x128xf32>
    %89 = arith.addf %86, %88 : vector<8x128xf32>
    %90 = vector.extract_strided_slice %30 {offsets = [0, 128], sizes = [8, 128], strides = [1, 1]} : vector<8x256xf32> to vector<8x128xf32>
    %91 = arith.addf %90, %89 : vector<8x128xf32>
    %c0_48 = arith.constant 0 : index
    %c128_49 = arith.constant 128 : index
    %92 = vector.load %arg18[%c0_48, %c128_49] : memref<8x256xf32, #tpu.memory_space<vmem>>, vector<8x128xf32>
    tpu.vector_store %arg18[%c0_48, %c128_49], %91 {strides = array<i32>} : memref<8x256xf32, #tpu.memory_space<vmem>>, vector<8x128xf32>,
    %c0_50 = arith.constant 0 : index
    %c0_51 = arith.constant 0 : index
    %93 = vector.load %arg7[%c0_50, %c0_51] : memref<16x8xbf16, #tpu.memory_space<vmem>>, vector<16x8xbf16>
    %c0_52 = arith.constant 0 : index
    %c0_53 = arith.constant 0 : index
    %94 = vector.load %arg18[%c0_52, %c0_53] : memref<8x256xf32, #tpu.memory_space<vmem>>, vector<8x256xf32>
    %95 = arith.truncf %94 : vector<8x256xf32> to vector<8x256xbf16>
    %cst_54 = arith.constant dense<0.000000e+00> : vector<16x256xf32>
    %96 = tpu.matmul %93, %95, %cst_54 {dimension_numbers = #tpu.dot_dimension_numbers<[1], [0], [0], [1], [0, 0, 1, 1], [], []>} : vector<16x8xbf16>, vector<8x256xbf16>, vector<16x256xf32> -> vector<16x256xf32>
    %97 = arith.addf %96, %4 : vector<16x256xf32>
    %c0_55 = arith.constant 0 : index
    %c0_56 = arith.constant 0 : index
    %98 = vector.load %arg8[%c0_55, %c0_56] : memref<16x1xf32, #tpu.memory_space<vmem>>, vector<16x1xf32>
    %c0_57 = arith.constant 0 : index
    %c0_58 = arith.constant 0 : index
    %99 = vector.load %arg9[%c0_57, %c0_58] : memref<16x1xf32, #tpu.memory_space<vmem>>, vector<16x1xf32>
    %cst_59 = arith.constant dense<0.000000e+00> : vector<16xf32>
    %100 = vector.multi_reduction <add>, %3, %cst_59 [1] : vector<16x256xf32> to vector<16xf32>
    %101 = vector.shape_cast %100 : vector<16xf32> to vector<16x1xf32>
    %cst_60 = arith.constant 3.906250e-03 : f32
    %102 = vector.broadcast %cst_60 : f32 to vector<16x1xf32>
    %103 = arith.mulf %101, %102 : vector<16x1xf32>
    %104 = arith.mulf %3, %3 : vector<16x256xf32>
    %cst_61 = arith.constant dense<0.000000e+00> : vector<16xf32>
    %105 = vector.multi_reduction <add>, %104, %cst_61 [1] : vector<16x256xf32> to vector<16xf32>
    %106 = vector.shape_cast %105 : vector<16xf32> to vector<16x1xf32>
    %cst_62 = arith.constant 3.906250e-03 : f32
    %107 = vector.broadcast %cst_62 : f32 to vector<16x1xf32>
    %108 = arith.mulf %106, %107 : vector<16x1xf32>
    %109 = arith.mulf %103, %103 : vector<16x1xf32>
    %110 = arith.subf %108, %109 : vector<16x1xf32>
    %cst_63 = arith.constant 9.99999974E-6 : f32
    %111 = vector.broadcast %cst_63 : f32 to vector<16x1xf32>
    %112 = arith.addf %110, %111 : vector<16x1xf32>
    %113 = math.rsqrt %112 : vector<16x1xf32>
    %114 = arith.mulf %98, %113 : vector<16x1xf32>
    %115 = vector.broadcast %114 : vector<16x1xf32> to vector<16x256xf32>
    %116 = arith.mulf %3, %115 : vector<16x256xf32>
    %117 = arith.mulf %103, %114 : vector<16x1xf32>
    %118 = arith.subf %99, %117 : vector<16x1xf32>
    %119 = vector.broadcast %118 : vector<16x1xf32> to vector<16x256xf32>
    %120 = arith.addf %116, %119 : vector<16x256xf32>
    %c0_64 = arith.constant 0 : index
    %c0_65 = arith.constant 0 : index
    %121 = vector.load %arg15[%c0_64, %c0_65] : memref<16x256xf32, #tpu.memory_space<vmem>>, vector<16x256xf32>
    tpu.vector_store %arg15[%c0_64, %c0_65], %120 {strides = array<i32>} : memref<16x256xf32, #tpu.memory_space<vmem>>, vector<16x256xf32>,
    %c0_66 = arith.constant 0 : index
    %c0_67 = arith.constant 0 : index
    %122 = vector.load %arg10[%c0_66, %c0_67] : memref<16x1xf32, #tpu.memory_space<vmem>>, vector<16x1xf32>
    %c0_68 = arith.constant 0 : index
    %c0_69 = arith.constant 0 : index
    %123 = vector.load %arg11[%c0_68, %c0_69] : memref<16x1xf32, #tpu.memory_space<vmem>>, vector<16x1xf32>
    %cst_70 = arith.constant dense<0.000000e+00> : vector<16xf32>
    %124 = vector.multi_reduction <add>, %97, %cst_70 [1] : vector<16x256xf32> to vector<16xf32>
    %125 = vector.shape_cast %124 : vector<16xf32> to vector<16x1xf32>
    %cst_71 = arith.constant 3.906250e-03 : f32
    %126 = vector.broadcast %cst_71 : f32 to vector<16x1xf32>
    %127 = arith.mulf %125, %126 : vector<16x1xf32>
    %128 = arith.mulf %97, %97 : vector<16x256xf32>
    %cst_72 = arith.constant dense<0.000000e+00> : vector<16xf32>
    %129 = vector.multi_reduction <add>, %128, %cst_72 [1] : vector<16x256xf32> to vector<16xf32>
    %130 = vector.shape_cast %129 : vector<16xf32> to vector<16x1xf32>
    %cst_73 = arith.constant 3.906250e-03 : f32
    %131 = vector.broadcast %cst_73 : f32 to vector<16x1xf32>
    %132 = arith.mulf %130, %131 : vector<16x1xf32>
    %133 = arith.mulf %127, %127 : vector<16x1xf32>
    %134 = arith.subf %132, %133 : vector<16x1xf32>
    %cst_74 = arith.constant 9.99999974E-6 : f32
    %135 = vector.broadcast %cst_74 : f32 to vector<16x1xf32>
    %136 = arith.addf %134, %135 : vector<16x1xf32>
    %137 = math.rsqrt %136 : vector<16x1xf32>
    %138 = arith.mulf %122, %137 : vector<16x1xf32>
    %139 = vector.broadcast %138 : vector<16x1xf32> to vector<16x256xf32>
    %140 = arith.mulf %97, %139 : vector<16x256xf32>
    %141 = arith.mulf %127, %138 : vector<16x1xf32>
    %142 = arith.subf %123, %141 : vector<16x1xf32>
    %143 = vector.broadcast %142 : vector<16x1xf32> to vector<16x256xf32>
    %144 = arith.addf %140, %143 : vector<16x256xf32>
    %c0_75 = arith.constant 0 : index
    %c0_76 = arith.constant 0 : index
    %145 = vector.load %arg16[%c0_75, %c0_76] : memref<16x256xf32, #tpu.memory_space<vmem>>, vector<16x256xf32>
    tpu.vector_store %arg16[%c0_75, %c0_76], %144 {strides = array<i32>} : memref<16x256xf32, #tpu.memory_space<vmem>>, vector<16x256xf32>,
    return
  }
}

</mosaic_0001>

<llo_original>
// kernel: ffc_bn_act_forward.1
$region0: #{ffc_bn_act_forward.1}
  #allocation0 [shape = 'u32[]', space=smem, size = 0x4, offset = 0x4, fixed_abs, tag = 'smem constant byte address 0x4 - core index']
  #allocation1 [shape = 'u32[144,128]{1,0:T(1,128)}', space=vmem, size = 0x12000, scoped, tag = 'internal scratch']
  #allocation2 [shape = 'f32[16,256]{1,0:T(8,128)}', space=vmem, size = 0x4000, scoped, tag = 'scratch operand']
  #allocation3 [shape = 'f32[8,256]{1,0:T(8,128)}', space=vmem, size = 0x2000, scoped, tag = 'scratch operand']
  %s0 = inlined_call_operand.vmem [shape: bf16[16,256], index: 0, kind: input, shape index: {}]
  %s1 = inlined_call_operand.vmem [shape: bf16[40,16], index: 1, kind: input, shape index: {}]
  %s2 = inlined_call_operand.vmem [shape: f32[8,1], index: 2, kind: input, shape index: {}]
  %s3 = inlined_call_operand.hbm [shape: f32[8,1], index: 3, kind: input, shape index: {}]
  %s4 = inlined_call_operand.vmem [shape: bf16[16,16], index: 4, kind: input, shape index: {}]
  %s5 = inlined_call_operand.vmem [shape: f32[16,1], index: 5, kind: input, shape index: {}]
  %s6 = inlined_call_operand.vmem [shape: f32[16,1], index: 6, kind: input, shape index: {}]
  %s7 = inlined_call_operand.vmem [shape: bf16[16,8], index: 7, kind: input, shape index: {}]
  %s8 = inlined_call_operand.vmem [shape: f32[16,1], index: 8, kind: input, shape index: {}]
  %s9 = inlined_call_operand.vmem [shape: f32[16,1], index: 9, kind: input, shape index: {}]
  %s10 = inlined_call_operand.vmem [shape: f32[16,1], index: 10, kind: input, shape index: {}]
  %s11 = inlined_call_operand.vmem [shape: f32[16,1], index: 11, kind: input, shape index: {}]
  %s12 = inlined_call_operand.vmem [shape: bf16[128,256], index: 12, kind: input, shape index: {}]
  %s13 = inlined_call_operand.vmem [shape: bf16[128,128], index: 13, kind: input, shape index: {}]
  %s14 = inlined_call_operand.vmem [shape: bf16[128,128], index: 14, kind: input, shape index: {}]
  %s15 = inlined_call_operand.vmem [shape: f32[16,256], index: 15, kind: output, shape index: {0}]
  %s16 = inlined_call_operand.vmem [shape: f32[16,256], index: 16, kind: output, shape index: {1}]
  %17 = xla_tuple %s15, %s16
  %s18 = sld [smem:[#allocation0]]
  $region82: #{ffc_bn_act_forward.1} parent=0
    _
  %s20 = ssub.s32 1, %s18
  %s21 = scalar_select 0, %s20, %s18
  $region1: #{ffc_bn_act_forward.1} parent=0
    #allocation4 [shape = 'u8[4096]{0}', space=vmem, size = 0x1000, scoped, tag = 'input window, operand 3, single buffered']
    #allocation5 [shape = 's32[1]{0}', space=sflag, size = 0x4, scoped, tag = 'scoped memory for ffc_bn_act_forward.1']
    %22 = vsyncpa [#allocation5], 0
    // Predicated region
    $region2: #{ffc_bn_act_forward.1} parent=1 // pred_check
      _
    $region3: #{ffc_bn_act_forward.1} parent=1 // pred_check_branch
      %24 = sbr.rel (0) target = $region5
    $region4: #{ffc_bn_act_forward.1} parent=1 // pred_region
      _
    $region5: #{ffc_bn_act_forward.1} parent=1 // pred_fallthru
      _
    // Predicated region
    $region6: #{ffc_bn_act_forward.1} parent=1 // pred_check
      _
    $region7: #{ffc_bn_act_forward.1} parent=1 // pred_check_branch
      %26 = sbr.rel (0) target = $region9
    $region8: #{ffc_bn_act_forward.1} parent=1 // pred_region
      _
    $region9: #{ffc_bn_act_forward.1} parent=1 // pred_fallthru
      _
    // Predicated region
    $region10: #{ffc_bn_act_forward.1} parent=1 // pred_check
      _
    $region11: #{ffc_bn_act_forward.1} parent=1 // pred_check_branch
      %28 = sbr.rel (0) target = $region13
    $region12: #{ffc_bn_act_forward.1} parent=1 // pred_region
      _
    $region13: #{ffc_bn_act_forward.1} parent=1 // pred_fallthru
      _
    // Predicated region
    $region14: #{ffc_bn_act_forward.1} parent=1 // pred_check
      _
    $region15: #{ffc_bn_act_forward.1} parent=1 // pred_check_branch
      %30 = sbr.rel (0) target = $region17
    $region16: #{ffc_bn_act_forward.1} parent=1 // pred_region
      %s32 = ssub.s32 128, 128
      %33 = vsyncadd [#allocation5], %s32
      %s35 = sshll.u32 [#allocation4], 4
      %s36 = int_to_ptr.vmem [resolvable:$true] %s35
      %38 = dma.hbm_to_vmem [thread:$0]  %s3, 128, %s36, [#allocation5]
    $region17: #{ffc_bn_act_forward.1} parent=1 // pred_fallthru
      _
    // Predicated region
    $region18: #{ffc_bn_act_forward.1} parent=1 // pred_check
      _
    $region19: #{ffc_bn_act_forward.1} parent=1 // pred_check_branch
      %40 = sbr.rel (0) target = $region21
    $region20: #{ffc_bn_act_forward.1} parent=1 // pred_region
      _
    $region21: #{ffc_bn_act_forward.1} parent=1 // pred_fallthru
      _
    // Predicated region
    $region22: #{ffc_bn_act_forward.1} parent=1 // pred_check
      _
    $region23: #{ffc_bn_act_forward.1} parent=1 // pred_check_branch
      %42 = sbr.rel (0) target = $region25
    $region24: #{ffc_bn_act_forward.1} parent=1 // pred_region
      _
    $region25: #{ffc_bn_act_forward.1} parent=1 // pred_fallthru
      _
    // Predicated region
    $region26: #{ffc_bn_act_forward.1} parent=1 // pred_check
      _
    $region27: #{ffc_bn_act_forward.1} parent=1 // pred_check_branch
      %44 = sbr.rel (0) target = $region29
    $region28: #{ffc_bn_act_forward.1} parent=1 // pred_region
      _
    $region29: #{ffc_bn_act_forward.1} parent=1 // pred_fallthru
      _
    // Predicated region
    $region30: #{ffc_bn_act_forward.1} parent=1 // pred_check
      _
    $region31: #{ffc_bn_act_forward.1} parent=1 // pred_check_branch
      %46 = sbr.rel (0) target = $region33
    $region32: #{ffc_bn_act_forward.1} parent=1 // pred_region
      _
    $region33: #{ffc_bn_act_forward.1} parent=1 // pred_fallthru
      _
    // Predicated region
    $region34: #{ffc_bn_act_forward.1} parent=1 // pred_check
      _
    $region35: #{ffc_bn_act_forward.1} parent=1 // pred_check_branch
      %48 = sbr.rel (0) target = $region37
    $region36: #{ffc_bn_act_forward.1} parent=1 // pred_region
      _
    $region37: #{ffc_bn_act_forward.1} parent=1 // pred_fallthru
      _
    // Predicated region
    $region38: #{ffc_bn_act_forward.1} parent=1 // pred_check
      _
    $region39: #{ffc_bn_act_forward.1} parent=1 // pred_check_branch
      %50 = sbr.rel (0) target = $region41
    $region40: #{ffc_bn_act_forward.1} parent=1 // pred_region
      _
    $region41: #{ffc_bn_act_forward.1} parent=1 // pred_fallthru
      _
    // Predicated region
    $region42: #{ffc_bn_act_forward.1} parent=1 // pred_check
      _
    $region43: #{ffc_bn_act_forward.1} parent=1 // pred_check_branch
      %52 = sbr.rel (0) target = $region45
    $region44: #{ffc_bn_act_forward.1} parent=1 // pred_region
      _
    $region45: #{ffc_bn_act_forward.1} parent=1 // pred_fallthru
      _
    // Predicated region
    $region46: #{ffc_bn_act_forward.1} parent=1 // pred_check
      _
    $region47: #{ffc_bn_act_forward.1} parent=1 // pred_check_branch
      %54 = sbr.rel (0) target = $region49
    $region48: #{ffc_bn_act_forward.1} parent=1 // pred_region
      _
    $region49: #{ffc_bn_act_forward.1} parent=1 // pred_fallthru
      _
    // Predicated region
    $region50: #{ffc_bn_act_forward.1} parent=1 // pred_check
      _
    $region51: #{ffc_bn_act_forward.1} parent=1 // pred_check_branch
      %56 = sbr.rel (0) target = $region53
    $region52: #{ffc_bn_act_forward.1} parent=1 // pred_region
      _
    $region53: #{ffc_bn_act_forward.1} parent=1 // pred_fallthru
      _
    // Predicated region
    $region54: #{ffc_bn_act_forward.1} parent=1 // pred_check
      _
    $region55: #{ffc_bn_act_forward.1} parent=1 // pred_check_branch
      %58 = sbr.rel (0) target = $region57
    $region56: #{ffc_bn_act_forward.1} parent=1 // pred_region
      _
    $region57: #{ffc_bn_act_forward.1} parent=1 // pred_fallthru
      _
    // Predicated region
    $region58: #{ffc_bn_act_forward.1} parent=1 // pred_check
      _
    $region59: #{ffc_bn_act_forward.1} parent=1 // pred_check_branch
      %60 = sbr.rel (0) target = $region61
    $region60: #{ffc_bn_act_forward.1} parent=1 // pred_region
      _
    $region61: #{ffc_bn_act_forward.1} parent=1 // pred_fallthru
      _
    // Predicated region
    $region62: #{ffc_bn_act_forward.1} parent=1 // pred_check
      _
    $region63: #{ffc_bn_act_forward.1} parent=1 // pred_check_branch
      %62 = sbr.rel (0) target = $region65
    $region64: #{ffc_bn_act_forward.1} parent=1 // pred_region
      %63 = dma.done [#allocation5], 128
    $region65: #{ffc_bn_act_forward.1} parent=1 // pred_fallthru
      _
    %v65 = vld [vmem:[%s0] sm:$0xff]
    %v66 = vld [vmem:[%s0 + $0x8] sm:$0xff]
    %v67 = vld [vmem:[%s1] sm:$0xf]
    %v68 = vld [vmem:[%s1 + $0x4] sm:$0xf]
    %v69 = vld [vmem:[%s1 + $0x8] sm:$0xf]
    %v70 = vld [vmem:[%s1 + $0xc] sm:$0xf]
    %v71 = vld [vmem:[%s1 + $0x10] sm:$0xf]
    %v77 = vunpack.c.l.b16 %v67
    %v78 = vunpack.c.l.b16 %v68
    %v79 = vunpack.c.l.b16 %v69
    %v80 = vunpack.c.l.b16 %v70
    %v81 = vunpack.c.l.b16 %v71
    %v82 = vpack.c.b16 %v78, %v77
    %v83 = vpack.c.b16 %v80, %v79
    %v84 = vpack.c.b16 %v81, %v81
    %v87 = vunpack.c.l.b16 %v65
    %v88 = vunpack.c.h.b16 %v65
    %v89 = vunpack.c.l.b16 %v66
    %v90 = vunpack.c.h.b16 %v66
    %v91 = vpack.c.b16 %v89, %v87
    %v92 = vpack.c.b16 %v90, %v88
    %vm95 = vcmask 130048
    %v97 = vsel %vm95, %v82, 0
    %v100 = vsel %vm95, %v83, 0
    %v103 = vsel %vm95, %v84, 0
    %105 = vmatprep.subr.bf16.mxu0 %v92
    %106 = vmatpush1.bf16.msra.mxu0 %v91
    %107 = vmatprep.subr.bf16.mxu0 0
    %108 = vmatpush1.bf16.msra.mxu0 0
    %109 = vmatprep.subr.bf16.mxu0 0
    %110 = vmatpush1.bf16.msra.mxu0 0
    %111 = vmatprep.subr.bf16.mxu0 0
    %112 = vmatpush1.bf16.msra.mxu0 0
    %113 = vmatprep.subr.bf16.mxu0 0
    %114 = vmatpush1.bf16.msra.mxu0 0
    %115 = vmatprep.subr.bf16.mxu0 0
    %116 = vmatpush1.bf16.msra.mxu0 0
    %117 = vmatprep.subr.bf16.mxu0 0
    %118 = vmatpush1.bf16.msra.mxu0 0
    %119 = vmatprep.subr.bf16.mxu0 0
    %120 = vmatpush1.bf16.msra.mxu0 0
    %121 = vmatprep.subr.bf16.mxu0 0
    %122 = vmatpush1.bf16.msra.mxu0 0
    %123 = vmatprep.subr.bf16.mxu0 0
    %124 = vmatpush1.bf16.msra.mxu0 0
    %125 = vmatprep.subr.bf16.mxu0 0
    %126 = vmatpush1.bf16.msra.mxu0 0
    %127 = vmatprep.subr.bf16.mxu0 0
    %128 = vmatpush1.bf16.msra.mxu0 0
    %129 = vmatprep.subr.bf16.mxu0 0
    %130 = vmatpush1.bf16.msra.mxu0 0
    %131 = vmatprep.subr.bf16.mxu0 0
    %132 = vmatpush1.bf16.msra.mxu0 0
    %133 = vmatprep.subr.bf16.mxu0 0
    %134 = vmatpush1.bf16.msra.mxu0 0
    %135 = vmatprep.subr.bf16.mxu0 0
    %136 = vmatpush1.bf16.msra.mxu0 0
    %137 = vmatprep.mubr.bf16.mxu0 0
    %138 = vmatmul.mubr.bf16.gmra.mrb[0].mxu0 %v97
    %v139 = vpop.f32.mrb[0].mxu0
    %v140 = vadd.f32 0.0, %v139
    %v141 = vpop.f32.mrb[0].mxu0
    %v142 = vadd.f32 0.0, %v141
    %v143 = vpop.f32.mrb[0].mxu0
    %v144 = vadd.f32 0.0, %v143
    %v145 = vpop.f32.mrb[0].mxu0
    %v146 = vadd.f32 0.0, %v145
    %147 = vmatprep.mubr.bf16.mxu0 0
    %148 = vmatmul.mubr.bf16.gmra.mrb[0].mxu0 %v100
    %v149 = vpop.f32.mrb[0].mxu0
    %v150 = vadd.f32 0.0, %v149
    %v151 = vpop.f32.mrb[0].mxu0
    %v152 = vadd.f32 0.0, %v151
    %v153 = vpop.f32.mrb[0].mxu0
    %v154 = vadd.f32 0.0, %v153
    %v155 = vpop.f32.mrb[0].mxu0
    %v156 = vadd.f32 0.0, %v155
    %157 = vmatprep.mubr.bf16.mxu0 0
    %158 = vmatmul.mubr.bf16.gmra.mrb[0].mxu0 %v103
    %v159 = vpop.f32.mrb[0].mxu0
    %v160 = vadd.f32 0.0, %v159
    %v161 = vpop.f32.mrb[0].mxu0
    %v162 = vadd.f32 0.0, %v161
    %v163 = vpop.f32.mrb[0].mxu0
    %v164 = vpop.f32.mrb[0].mxu0
    %165 = vdwg.mxu0
    %v166 = vld [vmem:[%s2] sm:$0xff]
    %v167 = vld [vmem:[#allocation4] sm:$0xff]
    %v168 = vadd.f32 %v160, %v162
    %169 = vadd.xlane.f32.xlu0 %v168
    %v170 = vpop.xlane.xlu0 %169
    %v171 = vmul.f32 %v170, 0.00390625
    %v172 = vmul.f32 %v160, %v160
    %v173 = vmul.f32 %v162, %v162
    %v174 = vadd.f32 %v172, %v173
    %175 = vadd.xlane.f32.xlu0 %v174
    %v176 = vpop.xlane.xlu0 %175
    %v177 = vmul.f32 %v176, 0.00390625
    %v178 = vmul.f32 %v171, %v171
    %v179 = vsub.f32 %v177, %v178
    %v180 = vadd.f32 %v179, 1e-05
    %v181 = vrsqrt.pop %v180
    %v182 = vmul.f32 %v166, %v181
    %184 = vset.pattern.permute.xlu0 0
    %185 = vperm.xlu0 %184, %v182
    %v186 = vpop.permute.xlu0 %185
    %v188 = vmul.f32 %v160, %v186
    %v189 = vmul.f32 %v162, %v186
    %v190 = vmul.f32 %v171, %v182
    %v191 = vsub.f32 %v167, %v190
    %193 = vset.pattern.permute.xlu0 0
    %194 = vperm.xlu0 %193, %v191
    %v195 = vpop.permute.xlu0 %194
    %v197 = vadd.f32 %v188, %v195
    %v198 = vadd.f32 %v189, %v195
    %v199 = vmax.f32 %v197, 0.0
    %v200 = vmax.f32 %v198, 0.0
    %v201 = vpack.c.bf16 %v199, %v199
    %v202 = vpack.c.bf16 %v200, %v200
    %v203 = vld [vmem:[%s12] sm:$0xff]
    %v204 = vld [vmem:[%s12 + $0x8] sm:$0xff]
    %v205 = vld [vmem:[%s12 + $0x10] sm:$0xff]
    %v206 = vld [vmem:[%s12 + $0x18] sm:$0xff]
    %v207 = vld [vmem:[%s12 + $0x20] sm:$0xff]
    %v208 = vld [vmem:[%s12 + $0x28] sm:$0xff]
    %v209 = vld [vmem:[%s12 + $0x30] sm:$0xff]
    %v210 = vld [vmem:[%s12 + $0x38] sm:$0xff]
    %v211 = vld [vmem:[%s12 + $0x40] sm:$0xff]
    %v212 = vld [vmem:[%s12 + $0x48] sm:$0xff]
    %v213 = vld [vmem:[%s12 + $0x50] sm:$0xff]
    %v214 = vld [vmem:[%s12 + $0x58] sm:$0xff]
    %v215 = vld [vmem:[%s12 + $0x60] sm:$0xff]
    %v216 = vld [vmem:[%s12 + $0x68] sm:$0xff]
    %v217 = vld [vmem:[%s12 + $0x70] sm:$0xff]
    %v218 = vld [vmem:[%s12 + $0x78] sm:$0xff]
    %v235 = vunpack.c.l.b16 %v203
    %v236 = vunpack.c.h.b16 %v203
    %v237 = vunpack.c.l.b16 %v204
    %v238 = vunpack.c.h.b16 %v204
    %v239 = vunpack.c.l.b16 %v205
    %v240 = vunpack.c.h.b16 %v205
    %v241 = vunpack.c.l.b16 %v206
    %v242 = vunpack.c.h.b16 %v206
    %v243 = vunpack.c.l.b16 %v207
    %v244 = vunpack.c.h.b16 %v207
    %v245 = vunpack.c.l.b16 %v208
    %v246 = vunpack.c.h.b16 %v208
    %v247 = vunpack.c.l.b16 %v209
    %v248 = vunpack.c.h.b16 %v209
    %v249 = vunpack.c.l.b16 %v210
    %v250 = vunpack.c.h.b16 %v210
    %v251 = vunpack.c.l.b16 %v211
    %v252 = vunpack.c.h.b16 %v211
    %v253 = vunpack.c.l.b16 %v212
    %v254 = vunpack.c.h.b16 %v212
    %v255 = vunpack.c.l.b16 %v213
    %v256 = vunpack.c.h.b16 %v213
    %v257 = vunpack.c.l.b16 %v214
    %v258 = vunpack.c.h.b16 %v214
    %v259 = vunpack.c.l.b16 %v215
    %v260 = vunpack.c.h.b16 %v215
    %v261 = vunpack.c.l.b16 %v216
    %v262 = vunpack.c.h.b16 %v216
    %v263 = vunpack.c.l.b16 %v217
    %v264 = vunpack.c.h.b16 %v217
    %v265 = vunpack.c.l.b16 %v218
    %v266 = vunpack.c.h.b16 %v218
    %v267 = vpack.c.b16 %v237, %v235
    %v268 = vpack.c.b16 %v238, %v236
    %v269 = vpack.c.b16 %v241, %v239
    %v270 = vpack.c.b16 %v242, %v240
    %v271 = vpack.c.b16 %v245, %v243
    %v272 = vpack.c.b16 %v246, %v244
    %v273 = vpack.c.b16 %v249, %v247
    %v274 = vpack.c.b16 %v250, %v248
    %v275 = vpack.c.b16 %v253, %v251
    %v276 = vpack.c.b16 %v254, %v252
    %v277 = vpack.c.b16 %v257, %v255
    %v278 = vpack.c.b16 %v258, %v256
    %v279 = vpack.c.b16 %v261, %v259
    %v280 = vpack.c.b16 %v262, %v260
    %v281 = vpack.c.b16 %v265, %v263
    %v282 = vpack.c.b16 %v266, %v264
    %299 = vmatprep.subr.bf16.mxu0 %v268
    %300 = vmatpush1.bf16.msra.mxu0 %v267
    %301 = vmatprep.subr.bf16.mxu0 %v270
    %302 = vmatpush1.bf16.msra.mxu0 %v269
    %303 = vmatprep.subr.bf16.mxu0 %v272
    %304 = vmatpush1.bf16.msra.mxu0 %v271
    %305 = vmatprep.subr.bf16.mxu0 %v274
    %306 = vmatpush1.bf16.msra.mxu0 %v273
    %307 = vmatprep.subr.bf16.mxu0 %v276
    %308 = vmatpush1.bf16.msra.mxu0 %v275
    %309 = vmatprep.subr.bf16.mxu0 %v278
    %310 = vmatpush1.bf16.msra.mxu0 %v277
    %311 = vmatprep.subr.bf16.mxu0 %v280
    %312 = vmatpush1.bf16.msra.mxu0 %v279
    %313 = vmatprep.subr.bf16.mxu0 %v282
    %314 = vmatpush1.bf16.msra.mxu0 %v281
    %315 = vmatprep.subr.bf16.mxu0 0
    %316 = vmatpush1.bf16.msra.mxu0 0
    %317 = vmatprep.subr.bf16.mxu0 0
    %318 = vmatpush1.bf16.msra.mxu0 0
    %319 = vmatprep.subr.bf16.mxu0 0
    %320 = vmatpush1.bf16.msra.mxu0 0
    %321 = vmatprep.subr.bf16.mxu0 0
    %322 = vmatpush1.bf16.msra.mxu0 0
    %323 = vmatprep.subr.bf16.mxu0 0
    %324 = vmatpush1.bf16.msra.mxu0 0
    %325 = vmatprep.subr.bf16.mxu0 0
    %326 = vmatpush1.bf16.msra.mxu0 0
    %327 = vmatprep.subr.bf16.mxu0 0
    %328 = vmatpush1.bf16.msra.mxu0 0
    %329 = vmatprep.subr.bf16.mxu0 0
    %330 = vmatpush1.bf16.msra.mxu0 0
    %331 = vmatprep.mubr.bf16.mxu0 0
    %332 = vmatmul.mubr.bf16.gmra.mrb[0].mxu0 %v201
    %v333 = vpop.f32.mrb[0].mxu0
    %v334 = vadd.f32 0.0, %v333
    %v335 = vpop.f32.mrb[0].mxu0
    %v336 = vadd.f32 0.0, %v335
    %v337 = vpop.f32.mrb[0].mxu0
    %v338 = vpop.f32.mrb[0].mxu0
    %339 = vdwg.mxu0
    %340 = vst [vmem:[#allocation2] sm:$0xff] %v334
    %341 = vst [vmem:[#allocation2 + $0x10] sm:$0xff] %v336
    %342 = vmatprep.subr.bf16.mxu0 %v268
    %343 = vmatpush1.bf16.msra.mxu0 %v267
    %344 = vmatprep.subr.bf16.mxu0 %v270
    %345 = vmatpush1.bf16.msra.mxu0 %v269
    %346 = vmatprep.subr.bf16.mxu0 %v272
    %347 = vmatpush1.bf16.msra.mxu0 %v271
    %348 = vmatprep.subr.bf16.mxu0 %v274
    %349 = vmatpush1.bf16.msra.mxu0 %v273
    %350 = vmatprep.subr.bf16.mxu0 %v276
    %351 = vmatpush1.bf16.msra.mxu0 %v275
    %352 = vmatprep.subr.bf16.mxu0 %v278
    %353 = vmatpush1.bf16.msra.mxu0 %v277
    %354 = vmatprep.subr.bf16.mxu0 %v280
    %355 = vmatpush1.bf16.msra.mxu0 %v279
    %356 = vmatprep.subr.bf16.mxu0 %v282
    %357 = vmatpush1.bf16.msra.mxu0 %v281
    %358 = vmatprep.subr.bf16.mxu0 0
    %359 = vmatpush1.bf16.msra.mxu0 0
    %360 = vmatprep.subr.bf16.mxu0 0
    %361 = vmatpush1.bf16.msra.mxu0 0
    %362 = vmatprep.subr.bf16.mxu0 0
    %363 = vmatpush1.bf16.msra.mxu0 0
    %364 = vmatprep.subr.bf16.mxu0 0
    %365 = vmatpush1.bf16.msra.mxu0 0
    %366 = vmatprep.subr.bf16.mxu0 0
    %367 = vmatpush1.bf16.msra.mxu0 0
    %368 = vmatprep.subr.bf16.mxu0 0
    %369 = vmatpush1.bf16.msra.mxu0 0
    %370 = vmatprep.subr.bf16.mxu0 0
    %371 = vmatpush1.bf16.msra.mxu0 0
    %372 = vmatprep.subr.bf16.mxu0 0
    %373 = vmatpush1.bf16.msra.mxu0 0
    %374 = vmatprep.mubr.bf16.mxu0 0
    %375 = vmatmul.mubr.bf16.gmra.mrb[0].mxu0 %v202
    %v376 = vpop.f32.mrb[0].mxu0
    %v377 = vadd.f32 0.0, %v376
    %v378 = vpop.f32.mrb[0].mxu0
    %v379 = vadd.f32 0.0, %v378
    %v380 = vpop.f32.mrb[0].mxu0
    %v381 = vpop.f32.mrb[0].mxu0
    %382 = vdwg.mxu0
    %383 = vst [vmem:[#allocation2 + $0x8] sm:$0xff] %v377
    %384 = vst [vmem:[#allocation2 + $0x18] sm:$0xff] %v379
    %v385 = vld [vmem:[%s4] sm:$0xf]
    %v386 = vld [vmem:[%s4 + $0x4] sm:$0xf]
    %v387 = vld [vmem:[#allocation2] sm:$0xff]
    %v388 = vld [vmem:[#allocation2 + $0x8] sm:$0xff]
    %v389 = vld [vmem:[#allocation2 + $0x10] sm:$0xff]
    %v390 = vld [vmem:[#allocation2 + $0x18] sm:$0xff]
    %v391 = vpack.c.bf16 %v389, %v387
    %v392 = vpack.c.bf16 %v390, %v388
    %v395 = vunpack.c.l.b16 %v385
    %v396 = vunpack.c.l.b16 %v386
    %v397 = vpack.c.b16 %v396, %v395
    %v399 = vsel %vm95, %v397, 0
    %401 = vmatprep.subr.bf16.mxu0 %v392
    %402 = vmatpush1.bf16.msra.mxu0 %v391
    %403 = vmatprep.subr.bf16.mxu0 0
    %404 = vmatpush1.bf16.msra.mxu0 0
    %405 = vmatprep.subr.bf16.mxu0 0
    %406 = vmatpush1.bf16.msra.mxu0 0
    %407 = vmatprep.subr.bf16.mxu0 0
    %408 = vmatpush1.bf16.msra.mxu0 0
    %409 = vmatprep.subr.bf16.mxu0 0
    %410 = vmatpush1.bf16.msra.mxu0 0
    %411 = vmatprep.subr.bf16.mxu0 0
    %412 = vmatpush1.bf16.msra.mxu0 0
    %413 = vmatprep.subr.bf16.mxu0 0
    %414 = vmatpush1.bf16.msra.mxu0 0
    %415 = vmatprep.subr.bf16.mxu0 0
    %416 = vmatpush1.bf16.msra.mxu0 0
    %417 = vmatprep.subr.bf16.mxu0 0
    %418 = vmatpush1.bf16.msra.mxu0 0
    %419 = vmatprep.subr.bf16.mxu0 0
    %420 = vmatpush1.bf16.msra.mxu0 0
    %421 = vmatprep.subr.bf16.mxu0 0
    %422 = vmatpush1.bf16.msra.mxu0 0
    %423 = vmatprep.subr.bf16.mxu0 0
    %424 = vmatpush1.bf16.msra.mxu0 0
    %425 = vmatprep.subr.bf16.mxu0 0
    %426 = vmatpush1.bf16.msra.mxu0 0
    %427 = vmatprep.subr.bf16.mxu0 0
    %428 = vmatpush1.bf16.msra.mxu0 0
    %429 = vmatprep.subr.bf16.mxu0 0
    %430 = vmatpush1.bf16.msra.mxu0 0
    %431 = vmatprep.subr.bf16.mxu0 0
    %432 = vmatpush1.bf16.msra.mxu0 0
    %433 = vmatprep.mubr.bf16.mxu0 0
    %434 = vmatmul.mubr.bf16.gmra.mrb[0].mxu0 %v399
    %v435 = vpop.f32.mrb[0].mxu0
    %v436 = vadd.f32 0.0, %v435
    %v437 = vpop.f32.mrb[0].mxu0
    %v438 = vadd.f32 0.0, %v437
    %v439 = vpop.f32.mrb[0].mxu0
    %v440 = vadd.f32 0.0, %v439
    %v441 = vpop.f32.mrb[0].mxu0
    %v442 = vadd.f32 0.0, %v441
    %443 = vdwg.mxu0
    %v444 = vld [vmem:[%s5] sm:$0xff]
    %v445 = vld [vmem:[%s5 + $0x8] sm:$0xff]
    %v446 = vld [vmem:[%s6] sm:$0xff]
    %v447 = vld [vmem:[%s6 + $0x8] sm:$0xff]
    %v448 = vadd.f32 %v436, %v438
    %449 = vadd.xlane.f32.xlu0 %v448
    %v450 = vpop.xlane.xlu0 %449
    %v451 = vadd.f32 %v440, %v442
    %452 = vadd.xlane.f32.xlu0 %v451
    %v453 = vpop.xlane.xlu0 %452
    %v454 = vmul.f32 %v450, 0.0076923077
    %v455 = vmul.f32 %v453, 0.0076923077
    %v456 = vmul.f32 %v436, %v436
    %v457 = vmul.f32 %v438, %v438
    %v458 = vmul.f32 %v440, %v440
    %v459 = vmul.f32 %v442, %v442
    %v460 = vadd.f32 %v456, %v457
    %461 = vadd.xlane.f32.xlu0 %v460
    %v462 = vpop.xlane.xlu0 %461
    %v463 = vadd.f32 %v458, %v459
    %464 = vadd.xlane.f32.xlu0 %v463
    %v465 = vpop.xlane.xlu0 %464
    %v466 = vmul.f32 %v462, 0.0076923077
    %v467 = vmul.f32 %v465, 0.0076923077
    %v468 = vmul.f32 %v454, %v454
    %v469 = vmul.f32 %v455, %v455
    %v470 = vsub.f32 %v466, %v468
    %v471 = vsub.f32 %v467, %v469
    %v472 = vadd.f32 %v470, 1e-05
    %v473 = vadd.f32 %v471, 1e-05
    %v474 = vrsqrt.pop %v472
    %v475 = vrsqrt.pop %v473
    %v476 = vmul.f32 %v444, %v474
    %v477 = vmul.f32 %v445, %v475
    %479 = vset.pattern.permute.xlu0 0
    %480 = vperm.xlu0 %479, %v476
    %v481 = vpop.permute.xlu0 %480
    %484 = vset.pattern.permute.xlu0 0
    %485 = vperm.xlu0 %484, %v477
    %v486 = vpop.permute.xlu0 %485
    %v488 = vmul.f32 %v436, %v481
    %v489 = vmul.f32 %v438, %v481
    %v490 = vmul.f32 %v440, %v486
    %v491 = vmul.f32 %v442, %v486
    %v492 = vmul.f32 %v454, %v476
    %v493 = vmul.f32 %v455, %v477
    %v494 = vsub.f32 %v446, %v492
    %v495 = vsub.f32 %v447, %v493
    %497 = vset.pattern.permute.xlu0 0
    %498 = vperm.xlu0 %497, %v494
    %v499 = vpop.permute.xlu0 %498
    %502 = vset.pattern.permute.xlu0 0
    %503 = vperm.xlu0 %502, %v495
    %v504 = vpop.permute.xlu0 %503
    %v506 = vadd.f32 %v488, %v499
    %v507 = vadd.f32 %v489, %v499
    %v508 = vadd.f32 %v490, %v504
    %v509 = vadd.f32 %v491, %v504
    %v510 = vmax.f32 %v506, 0.0
    %v511 = vmax.f32 %v507, 0.0
    %v512 = vmax.f32 %v508, 0.0
    %v513 = vmax.f32 %v509, 0.0
    %v514 = vpack.c.bf16 %v512, %v510
    %v515 = vpack.c.bf16 %v513, %v511
    %v516 = vld [vmem:[%s13] sm:$0xf]
    %v517 = vld [vmem:[%s13 + $0x4] sm:$0xf]
    %v518 = vld [vmem:[%s13 + $0x8] sm:$0xf]
    %v519 = vld [vmem:[%s13 + $0xc] sm:$0xf]
    %v520 = vld [vmem:[%s13 + $0x10] sm:$0xf]
    %v521 = vld [vmem:[%s13 + $0x14] sm:$0xf]
    %v522 = vld [vmem:[%s13 + $0x18] sm:$0xf]
    %v523 = vld [vmem:[%s13 + $0x1c] sm:$0xf]
    %v524 = vld [vmem:[%s13 + $0x20] sm:$0xf]
    %v525 = vld [vmem:[%s13 + $0x24] sm:$0xf]
    %v526 = vld [vmem:[%s13 + $0x28] sm:$0xf]
    %v527 = vld [vmem:[%s13 + $0x2c] sm:$0xf]
    %v528 = vld [vmem:[%s13 + $0x30] sm:$0xf]
    %v529 = vld [vmem:[%s13 + $0x34] sm:$0xf]
    %v530 = vld [vmem:[%s13 + $0x38] sm:$0xf]
    %v531 = vld [vmem:[%s13 + $0x3c] sm:$0xf]
    %v532 = vld [vmem:[%s14] sm:$0xf]
    %v533 = vld [vmem:[%s14 + $0x4] sm:$0xf]
    %v534 = vld [vmem:[%s14 + $0x8] sm:$0xf]
    %v535 = vld [vmem:[%s14 + $0xc] sm:$0xf]
    %v536 = vld [vmem:[%s14 + $0x10] sm:$0xf]
    %v537 = vld [vmem:[%s14 + $0x14] sm:$0xf]
    %v538 = vld [vmem:[%s14 + $0x18] sm:$0xf]
    %v539 = vld [vmem:[%s14 + $0x1c] sm:$0xf]
    %v540 = vld [vmem:[%s14 + $0x20] sm:$0xf]
    %v541 = vld [vmem:[%s14 + $0x24] sm:$0xf]
    %v542 = vld [vmem:[%s14 + $0x28] sm:$0xf]
    %v543 = vld [vmem:[%s14 + $0x2c] sm:$0xf]
    %v544 = vld [vmem:[%s14 + $0x30] sm:$0xf]
    %v545 = vld [vmem:[%s14 + $0x34] sm:$0xf]
    %v546 = vld [vmem:[%s14 + $0x38] sm:$0xf]
    %v547 = vld [vmem:[%s14 + $0x3c] sm:$0xf]
    %v549 = vrot.slane %v514, 4
    %v567 = vunpack.c.l.b16 %v532
    %v568 = vunpack.c.l.b16 %v533
    %v569 = vunpack.c.l.b16 %v534
    %v570 = vunpack.c.l.b16 %v535
    %v571 = vunpack.c.l.b16 %v536
    %v572 = vunpack.c.l.b16 %v537
    %v573 = vunpack.c.l.b16 %v538
    %v574 = vunpack.c.l.b16 %v539
    %v575 = vunpack.c.l.b16 %v540
    %v576 = vunpack.c.l.b16 %v541
    %v577 = vunpack.c.l.b16 %v542
    %v578 = vunpack.c.l.b16 %v543
    %v579 = vunpack.c.l.b16 %v544
    %v580 = vunpack.c.l.b16 %v545
    %v581 = vunpack.c.l.b16 %v546
    %v582 = vunpack.c.l.b16 %v547
    %v583 = vpack.c.b16 %v568, %v567
    %v584 = vpack.c.b16 %v570, %v569
    %v585 = vpack.c.b16 %v572, %v571
    %v586 = vpack.c.b16 %v574, %v573
    %v587 = vpack.c.b16 %v576, %v575
    %v588 = vpack.c.b16 %v578, %v577
    %v589 = vpack.c.b16 %v580, %v579
    %v590 = vpack.c.b16 %v582, %v581
    %599 = vmatprep.subr.bf16.mxu0 0
    %600 = vmatpush1.bf16.msra.mxu0 %v583
    %601 = vmatprep.subr.bf16.mxu0 0
    %602 = vmatpush1.bf16.msra.mxu0 %v584
    %603 = vmatprep.subr.bf16.mxu0 0
    %604 = vmatpush1.bf16.msra.mxu0 %v585
    %605 = vmatprep.subr.bf16.mxu0 0
    %606 = vmatpush1.bf16.msra.mxu0 %v586
    %607 = vmatprep.subr.bf16.mxu0 0
    %608 = vmatpush1.bf16.msra.mxu0 %v587
    %609 = vmatprep.subr.bf16.mxu0 0
    %610 = vmatpush1.bf16.msra.mxu0 %v588
    %611 = vmatprep.subr.bf16.mxu0 0
    %612 = vmatpush1.bf16.msra.mxu0 %v589
    %613 = vmatprep.subr.bf16.mxu0 0
    %614 = vmatpush1.bf16.msra.mxu0 %v590
    %615 = vmatprep.subr.bf16.mxu0 0
    %616 = vmatpush1.bf16.msra.mxu0 0
    %617 = vmatprep.subr.bf16.mxu0 0
    %618 = vmatpush1.bf16.msra.mxu0 0
    %619 = vmatprep.subr.bf16.mxu0 0
    %620 = vmatpush1.bf16.msra.mxu0 0
    %621 = vmatprep.subr.bf16.mxu0 0
    %622 = vmatpush1.bf16.msra.mxu0 0
    %623 = vmatprep.subr.bf16.mxu0 0
    %624 = vmatpush1.bf16.msra.mxu0 0
    %625 = vmatprep.subr.bf16.mxu0 0
    %626 = vmatpush1.bf16.msra.mxu0 0
    %627 = vmatprep.subr.bf16.mxu0 0
    %628 = vmatpush1.bf16.msra.mxu0 0
    %629 = vmatprep.subr.bf16.mxu0 0
    %630 = vmatpush1.bf16.msra.mxu0 0
    %631 = vmatprep.mubr.bf16.mxu0 0
    %632 = vmatmul.mubr.bf16.gmra.mrb[0].mxu0 %v549
    %v633 = vpop.f32.mrb[0].mxu0
    %v634 = vadd.f32 0.0, %v633
    %v635 = vpop.f32.mrb[0].mxu0
    %v636 = vpop.f32.mrb[0].mxu0
    %v637 = vpop.f32.mrb[0].mxu0
    %638 = vdwg.mxu0
    %v655 = vunpack.c.l.b16 %v516
    %v656 = vunpack.c.l.b16 %v517
    %v657 = vunpack.c.l.b16 %v518
    %v658 = vunpack.c.l.b16 %v519
    %v659 = vunpack.c.l.b16 %v520
    %v660 = vunpack.c.l.b16 %v521
    %v661 = vunpack.c.l.b16 %v522
    %v662 = vunpack.c.l.b16 %v523
    %v663 = vunpack.c.l.b16 %v524
    %v664 = vunpack.c.l.b16 %v525
    %v665 = vunpack.c.l.b16 %v526
    %v666 = vunpack.c.l.b16 %v527
    %v667 = vunpack.c.l.b16 %v528
    %v668 = vunpack.c.l.b16 %v529
    %v669 = vunpack.c.l.b16 %v530
    %v670 = vunpack.c.l.b16 %v531
    %v671 = vpack.c.b16 %v656, %v655
    %v672 = vpack.c.b16 %v658, %v657
    %v673 = vpack.c.b16 %v660, %v659
    %v674 = vpack.c.b16 %v662, %v661
    %v675 = vpack.c.b16 %v664, %v663
    %v676 = vpack.c.b16 %v666, %v665
    %v677 = vpack.c.b16 %v668, %v667
    %v678 = vpack.c.b16 %v670, %v669
    %687 = vmatprep.subr.bf16.mxu0 0
    %688 = vmatpush1.bf16.msra.mxu0 %v671
    %689 = vmatprep.subr.bf16.mxu0 0
    %690 = vmatpush1.bf16.msra.mxu0 %v672
    %691 = vmatprep.subr.bf16.mxu0 0
    %692 = vmatpush1.bf16.msra.mxu0 %v673
    %693 = vmatprep.subr.bf16.mxu0 0
    %694 = vmatpush1.bf16.msra.mxu0 %v674
    %695 = vmatprep.subr.bf16.mxu0 0
    %696 = vmatpush1.bf16.msra.mxu0 %v675
    %697 = vmatprep.subr.bf16.mxu0 0
    %698 = vmatpush1.bf16.msra.mxu0 %v676
    %699 = vmatprep.subr.bf16.mxu0 0
    %700 = vmatpush1.bf16.msra.mxu0 %v677
    %701 = vmatprep.subr.bf16.mxu0 0
    %702 = vmatpush1.bf16.msra.mxu0 %v678
    %703 = vmatprep.subr.bf16.mxu0 0
    %704 = vmatpush1.bf16.msra.mxu0 0
    %705 = vmatprep.subr.bf16.mxu0 0
    %706 = vmatpush1.bf16.msra.mxu0 0
    %707 = vmatprep.subr.bf16.mxu0 0
    %708 = vmatpush1.bf16.msra.mxu0 0
    %709 = vmatprep.subr.bf16.mxu0 0
    %710 = vmatpush1.bf16.msra.mxu0 0
    %711 = vmatprep.subr.bf16.mxu0 0
    %712 = vmatpush1.bf16.msra.mxu0 0
    %713 = vmatprep.subr.bf16.mxu0 0
    %714 = vmatpush1.bf16.msra.mxu0 0
    %715 = vmatprep.subr.bf16.mxu0 0
    %716 = vmatpush1.bf16.msra.mxu0 0
    %717 = vmatprep.subr.bf16.mxu0 0
    %718 = vmatpush1.bf16.msra.mxu0 0
    %719 = vmatprep.mubr.bf16.mxu0 0
    %720 = vmatmul.mubr.bf16.gmra.mrb[0].mxu0 %v514
    %v721 = vpop.f32.mrb[0].mxu0
    %v722 = vadd.f32 %v634, %v721
    %v723 = vpop.f32.mrb[0].mxu0
    %v724 = vpop.f32.mrb[0].mxu0
    %v725 = vpop.f32.mrb[0].mxu0
    %726 = vdwg.mxu0
    %v727 = vadd.f32 %v199, %v722
    %728 = vst [vmem:[#allocation3] sm:$0xff] %v727
    %v730 = vrot.slane %v515, 4
    %732 = vmatprep.subr.bf16.mxu0 0
    %733 = vmatpush1.bf16.msra.mxu0 %v583
    %734 = vmatprep.subr.bf16.mxu0 0
    %735 = vmatpush1.bf16.msra.mxu0 %v584
    %736 = vmatprep.subr.bf16.mxu0 0
    %737 = vmatpush1.bf16.msra.mxu0 %v585
    %738 = vmatprep.subr.bf16.mxu0 0
    %739 = vmatpush1.bf16.msra.mxu0 %v586
    %740 = vmatprep.subr.bf16.mxu0 0
    %741 = vmatpush1.bf16.msra.mxu0 %v587
    %742 = vmatprep.subr.bf16.mxu0 0
    %743 = vmatpush1.bf16.msra.mxu0 %v588
    %744 = vmatprep.subr.bf16.mxu0 0
    %745 = vmatpush1.bf16.msra.mxu0 %v589
    %746 = vmatprep.subr.bf16.mxu0 0
    %747 = vmatpush1.bf16.msra.mxu0 %v590
    %748 = vmatprep.subr.bf16.mxu0 0
    %749 = vmatpush1.bf16.msra.mxu0 0
    %750 = vmatprep.subr.bf16.mxu0 0
    %751 = vmatpush1.bf16.msra.mxu0 0
    %752 = vmatprep.subr.bf16.mxu0 0
    %753 = vmatpush1.bf16.msra.mxu0 0
    %754 = vmatprep.subr.bf16.mxu0 0
    %755 = vmatpush1.bf16.msra.mxu0 0
    %756 = vmatprep.subr.bf16.mxu0 0
    %757 = vmatpush1.bf16.msra.mxu0 0
    %758 = vmatprep.subr.bf16.mxu0 0
    %759 = vmatpush1.bf16.msra.mxu0 0
    %760 = vmatprep.subr.bf16.mxu0 0
    %761 = vmatpush1.bf16.msra.mxu0 0
    %762 = vmatprep.subr.bf16.mxu0 0
    %763 = vmatpush1.bf16.msra.mxu0 0
    %764 = vmatprep.mubr.bf16.mxu0 0
    %765 = vmatmul.mubr.bf16.gmra.mrb[0].mxu0 %v730
    %v766 = vpop.f32.mrb[0].mxu0
    %v767 = vadd.f32 0.0, %v766
    %v768 = vpop.f32.mrb[0].mxu0
    %v769 = vpop.f32.mrb[0].mxu0
    %v770 = vpop.f32.mrb[0].mxu0
    %771 = vdwg.mxu0
    %772 = vmatprep.subr.bf16.mxu0 0
    %773 = vmatpush1.bf16.msra.mxu0 %v671
    %774 = vmatprep.subr.bf16.mxu0 0
    %775 = vmatpush1.bf16.msra.mxu0 %v672
    %776 = vmatprep.subr.bf16.mxu0 0
    %777 = vmatpush1.bf16.msra.mxu0 %v673
    %778 = vmatprep.subr.bf16.mxu0 0
    %779 = vmatpush1.bf16.msra.mxu0 %v674
    %780 = vmatprep.subr.bf16.mxu0 0
    %781 = vmatpush1.bf16.msra.mxu0 %v675
    %782 = vmatprep.subr.bf16.mxu0 0
    %783 = vmatpush1.bf16.msra.mxu0 %v676
    %784 = vmatprep.subr.bf16.mxu0 0
    %785 = vmatpush1.bf16.msra.mxu0 %v677
    %786 = vmatprep.subr.bf16.mxu0 0
    %787 = vmatpush1.bf16.msra.mxu0 %v678
    %788 = vmatprep.subr.bf16.mxu0 0
    %789 = vmatpush1.bf16.msra.mxu0 0
    %790 = vmatprep.subr.bf16.mxu0 0
    %791 = vmatpush1.bf16.msra.mxu0 0
    %792 = vmatprep.subr.bf16.mxu0 0
    %793 = vmatpush1.bf16.msra.mxu0 0
    %794 = vmatprep.subr.bf16.mxu0 0
    %795 = vmatpush1.bf16.msra.mxu0 0
    %796 = vmatprep.subr.bf16.mxu0 0
    %797 = vmatpush1.bf16.msra.mxu0 0
    %798 = vmatprep.subr.bf16.mxu0 0
    %799 = vmatpush1.bf16.msra.mxu0 0
    %800 = vmatprep.subr.bf16.mxu0 0
    %801 = vmatpush1.bf16.msra.mxu0 0
    %802 = vmatprep.subr.bf16.mxu0 0
    %803 = vmatpush1.bf16.msra.mxu0 0
    %804 = vmatprep.mubr.bf16.mxu0 0
    %805 = vmatmul.mubr.bf16.gmra.mrb[0].mxu0 %v515
    %v806 = vpop.f32.mrb[0].mxu0
    %v807 = vadd.f32 %v767, %v806
    %v808 = vpop.f32.mrb[0].mxu0
    %v809 = vpop.f32.mrb[0].mxu0
    %v810 = vpop.f32.mrb[0].mxu0
    %811 = vdwg.mxu0
    %v812 = vadd.f32 %v200, %v807
    %813 = vst [vmem:[#allocation3 + $0x8] sm:$0xff] %v812
    %v814 = vld [vmem:[%s7] sm:$0xf]
    %v815 = vld [vmem:[%s7 + $0x4] sm:$0xf]
    %v816 = vld [vmem:[#allocation3] sm:$0xff]
    %v817 = vld [vmem:[#allocation3 + $0x8] sm:$0xff]
    %v818 = vpack.c.bf16 %v816, %v816
    %v819 = vpack.c.bf16 %v817, %v817
    %v822 = vunpack.c.l.b16 %v814
    %v823 = vunpack.c.l.b16 %v815
    %v824 = vpack.c.b16 %v823, %v822
    %vm825 = vcmask 64512
    %v827 = vsel %vm825, %v824, 0
    %vm829 = vcmask 1043456
    %v831 = vsel %vm829, %v818, 0
    %v834 = vsel %vm829, %v819, 0
    %836 = vmatprep.subr.bf16.mxu0 %v834
    %837 = vmatpush1.bf16.msra.mxu0 %v831
    %838 = vmatprep.subr.bf16.mxu0 0
    %839 = vmatpush1.bf16.msra.mxu0 0
    %840 = vmatprep.subr.bf16.mxu0 0
    %841 = vmatpush1.bf16.msra.mxu0 0
    %842 = vmatprep.subr.bf16.mxu0 0
    %843 = vmatpush1.bf16.msra.mxu0 0
    %844 = vmatprep.subr.bf16.mxu0 0
    %845 = vmatpush1.bf16.msra.mxu0 0
    %846 = vmatprep.subr.bf16.mxu0 0
    %847 = vmatpush1.bf16.msra.mxu0 0
    %848 = vmatprep.subr.bf16.mxu0 0
    %849 = vmatpush1.bf16.msra.mxu0 0
    %850 = vmatprep.subr.bf16.mxu0 0
    %851 = vmatpush1.bf16.msra.mxu0 0
    %852 = vmatprep.subr.bf16.mxu0 0
    %853 = vmatpush1.bf16.msra.mxu0 0
    %854 = vmatprep.subr.bf16.mxu0 0
    %855 = vmatpush1.bf16.msra.mxu0 0
    %856 = vmatprep.subr.bf16.mxu0 0
    %857 = vmatpush1.bf16.msra.mxu0 0
    %858 = vmatprep.subr.bf16.mxu0 0
    %859 = vmatpush1.bf16.msra.mxu0 0
    %860 = vmatprep.subr.bf16.mxu0 0
    %861 = vmatpush1.bf16.msra.mxu0 0
    %862 = vmatprep.subr.bf16.mxu0 0
    %863 = vmatpush1.bf16.msra.mxu0 0
    %864 = vmatprep.subr.bf16.mxu0 0
    %865 = vmatpush1.bf16.msra.mxu0 0
    %866 = vmatprep.subr.bf16.mxu0 0
    %867 = vmatpush1.bf16.msra.mxu0 0
    %868 = vmatprep.mubr.bf16.mxu0 0
    %869 = vmatmul.mubr.bf16.gmra.mrb[0].mxu0 %v827
    %v870 = vpop.f32.mrb[0].mxu0
    %v871 = vadd.f32 %v150, %v870
    %v872 = vpop.f32.mrb[0].mxu0
    %v873 = vadd.f32 %v152, %v872
    %v874 = vpop.f32.mrb[0].mxu0
    %v875 = vadd.f32 %v154, %v874
    %v876 = vpop.f32.mrb[0].mxu0
    %v877 = vadd.f32 %v156, %v876
    %878 = vdwg.mxu0
    %v879 = vld [vmem:[%s8] sm:$0xff]
    %v880 = vld [vmem:[%s8 + $0x8] sm:$0xff]
    %v881 = vld [vmem:[%s9] sm:$0xff]
    %v882 = vld [vmem:[%s9 + $0x8] sm:$0xff]
    %v883 = vadd.f32 %v140, %v142
    %884 = vadd.xlane.f32.xlu0 %v883
    %v885 = vpop.xlane.xlu0 %884
    %v886 = vadd.f32 %v144, %v146
    %887 = vadd.xlane.f32.xlu0 %v886
    %v888 = vpop.xlane.xlu0 %887
    %v889 = vmul.f32 %v885, 0.00390625
    %v890 = vmul.f32 %v888, 0.00390625
    %v891 = vmul.f32 %v140, %v140
    %v892 = vmul.f32 %v142, %v142
    %v893 = vmul.f32 %v144, %v144
    %v894 = vmul.f32 %v146, %v146
    %v895 = vadd.f32 %v891, %v892
    %896 = vadd.xlane.f32.xlu0 %v895
    %v897 = vpop.xlane.xlu0 %896
    %v898 = vadd.f32 %v893, %v894
    %899 = vadd.xlane.f32.xlu0 %v898
    %v900 = vpop.xlane.xlu0 %899
    %v901 = vmul.f32 %v897, 0.00390625
    %v902 = vmul.f32 %v900, 0.00390625
    %v903 = vmul.f32 %v889, %v889
    %v904 = vmul.f32 %v890, %v890
    %v905 = vsub.f32 %v901, %v903
    %v906 = vsub.f32 %v902, %v904
    %v907 = vadd.f32 %v905, 1e-05
    %v908 = vadd.f32 %v906, 1e-05
    %v909 = vrsqrt.pop %v907
    %v910 = vrsqrt.pop %v908
    %v911 = vmul.f32 %v879, %v909
    %v912 = vmul.f32 %v880, %v910
    %914 = vset.pattern.permute.xlu0 0
    %915 = vperm.xlu0 %914, %v911
    %v916 = vpop.permute.xlu0 %915
    %919 = vset.pattern.permute.xlu0 0
    %920 = vperm.xlu0 %919, %v912
    %v921 = vpop.permute.xlu0 %920
    %v923 = vmul.f32 %v140, %v916
    %v924 = vmul.f32 %v142, %v916
    %v925 = vmul.f32 %v144, %v921
    %v926 = vmul.f32 %v146, %v921
    %v927 = vmul.f32 %v889, %v911
    %v928 = vmul.f32 %v890, %v912
    %v929 = vsub.f32 %v881, %v927
    %v930 = vsub.f32 %v882, %v928
    %932 = vset.pattern.permute.xlu0 0
    %933 = vperm.xlu0 %932, %v929
    %v934 = vpop.permute.xlu0 %933
    %937 = vset.pattern.permute.xlu0 0
    %938 = vperm.xlu0 %937, %v930
    %v939 = vpop.permute.xlu0 %938
    %v941 = vadd.f32 %v923, %v934
    %v942 = vadd.f32 %v924, %v934
    %v943 = vadd.f32 %v925, %v939
    %v944 = vadd.f32 %v926, %v939
    %945 = vst [vmem:[%s15] sm:$0xff] %v941
    %946 = vst [vmem:[%s15 + $0x8] sm:$0xff] %v942
    %947 = vst [vmem:[%s15 + $0x10] sm:$0xff] %v943
    %948 = vst [vmem:[%s15 + $0x18] sm:$0xff] %v944
    %v949 = vld [vmem:[%s10] sm:$0xff]
    %v950 = vld [vmem:[%s10 + $0x8] sm:$0xff]
    %v951 = vld [vmem:[%s11] sm:$0xff]
    %v952 = vld [vmem:[%s11 + $0x8] sm:$0xff]
    %v953 = vadd.f32 %v871, %v873
    %954 = vadd.xlane.f32.xlu0 %v953
    %v955 = vpop.xlane.xlu0 %954
    %v956 = vadd.f32 %v875, %v877
    %957 = vadd.xlane.f32.xlu0 %v956
    %v958 = vpop.xlane.xlu0 %957
    %v959 = vmul.f32 %v955, 0.00390625
    %v960 = vmul.f32 %v958, 0.00390625
    %v961 = vmul.f32 %v871, %v871
    %v962 = vmul.f32 %v873, %v873
    %v963 = vmul.f32 %v875, %v875
    %v964 = vmul.f32 %v877, %v877
    %v965 = vadd.f32 %v961, %v962
    %966 = vadd.xlane.f32.xlu0 %v965
    %v967 = vpop.xlane.xlu0 %966
    %v968 = vadd.f32 %v963, %v964
    %969 = vadd.xlane.f32.xlu0 %v968
    %v970 = vpop.xlane.xlu0 %969
    %v971 = vmul.f32 %v967, 0.00390625
    %v972 = vmul.f32 %v970, 0.00390625
    %v973 = vmul.f32 %v959, %v959
    %v974 = vmul.f32 %v960, %v960
    %v975 = vsub.f32 %v971, %v973
    %v976 = vsub.f32 %v972, %v974
    %v977 = vadd.f32 %v975, 1e-05
    %v978 = vadd.f32 %v976, 1e-05
    %v979 = vrsqrt.pop %v977
    %v980 = vrsqrt.pop %v978
    %v981 = vmul.f32 %v949, %v979
    %v982 = vmul.f32 %v950, %v980
    %984 = vset.pattern.permute.xlu0 0
    %985 = vperm.xlu0 %984, %v981
    %v986 = vpop.permute.xlu0 %985
    %989 = vset.pattern.permute.xlu0 0
    %990 = vperm.xlu0 %989, %v982
    %v991 = vpop.permute.xlu0 %990
    %v993 = vmul.f32 %v871, %v986
    %v994 = vmul.f32 %v873, %v986
    %v995 = vmul.f32 %v875, %v991
    %v996 = vmul.f32 %v877, %v991
    %v997 = vmul.f32 %v959, %v981
    %v998 = vmul.f32 %v960, %v982
    %v999 = vsub.f32 %v951, %v997
    %v1000 = vsub.f32 %v952, %v998
    %1002 = vset.pattern.permute.xlu0 0
    %1003 = vperm.xlu0 %1002, %v999
    %v1004 = vpop.permute.xlu0 %1003
    %1007 = vset.pattern.permute.xlu0 0
    %1008 = vperm.xlu0 %1007, %v1000
    %v1009 = vpop.permute.xlu0 %1008
    %v1011 = vadd.f32 %v993, %v1004
    %v1012 = vadd.f32 %v994, %v1004
    %v1013 = vadd.f32 %v995, %v1009
    %v1014 = vadd.f32 %v996, %v1009
    %1015 = vst [vmem:[%s16] sm:$0xff] %v1011
    %1016 = vst [vmem:[%s16 + $0x8] sm:$0xff] %v1012
    %1017 = vst [vmem:[%s16 + $0x10] sm:$0xff] %v1013
    %1018 = vst [vmem:[%s16 + $0x18] sm:$0xff] %v1014
    // Predicated region
    $region66: #{ffc_bn_act_forward.1} parent=1 // pred_check
      _
    $region67: #{ffc_bn_act_forward.1} parent=1 // pred_check_branch
      %1020 = sbr.rel (0) target = $region69
    $region68: #{ffc_bn_act_forward.1} parent=1 // pred_region
      _
    $region69: #{ffc_bn_act_forward.1} parent=1 // pred_fallthru
      _
    // Predicated region
    $region70: #{ffc_bn_act_forward.1} parent=1 // pred_check
      _
    $region71: #{ffc_bn_act_forward.1} parent=1 // pred_check_branch
      %1022 = sbr.rel (0) target = $region73
    $region72: #{ffc_bn_act_forward.1} parent=1 // pred_region
      _
    $region73: #{ffc_bn_act_forward.1} parent=1 // pred_fallthru
      _
    // Predicated region
    $region74: #{ffc_bn_act_forward.1} parent=1 // pred_check
      _
    $region75: #{ffc_bn_act_forward.1} parent=1 // pred_check_branch
      %1024 = sbr.rel (0) target = $region77
    $region76: #{ffc_bn_act_forward.1} parent=1 // pred_region
      _
    $region77: #{ffc_bn_act_forward.1} parent=1 // pred_fallthru
      _
    // Predicated region
    $region78: #{ffc_bn_act_forward.1} parent=1 // pred_check
      _
    $region79: #{ffc_bn_act_forward.1} parent=1 // pred_check_branch
      %1026 = sbr.rel (0) target = $region81
    $region80: #{ffc_bn_act_forward.1} parent=1 // pred_region
      _
    $region81: #{ffc_bn_act_forward.1} parent=1 // pred_fallthru
      _
    %1027 = vsyncpa [#allocation5], 1

</llo_original>
